<compile_context>
chip_gen: v6e
topology: v6e:2x2x1
jax: 0.10.0
libtpu: 0.0.40
codegen_flags: <defaults>
</compile_context>

<pallas_src>
import jax
import jax.numpy as jnp
from jax.experimental import pallas as pl
from jax.experimental.pallas import tpu as pltpu


# ----------------------------------------------------------------------------- helpers
def _round_up(x, m):
    return (x + m - 1) // m * m


def _device_kind():
    try:
        return jax.devices()[0].device_kind.lower()
    except Exception:
        return ""


def _vmem_limit_bytes():
    """Per-core scoped-VMEM limit derived from the chip's physical capacity."""
    cap = 64 * 1024 * 1024                      # conservative default (v7x-sized)
    try:
        cap = int(getattr(pltpu.get_tpu_info(), "vmem_capacity_bytes", cap))
    except Exception:
        pass
    # ~96 MiB on 128-MiB chips (v5e/v6e), ~48 MiB on 64-MiB chips (v7x)
    return max(16 * 1024 * 1024, (cap * 3) // 4)


def _num_tensorcores():
    # v7x has 2 TensorCores per chip; v5e/v6e have 1.
    return 2 if "v7" in _device_kind() else 1


def _mxu_k_align():
    # v6e/v7x MXUs are 2x256x256 -> prefer 256-aligned contraction dims when already >=128.
    kind = _device_kind()
    return 256 if ("v6" in kind or "v7" in kind) else 128


def _pad_feature_dim(d, mxu_k):
    """Lane-dense padding: at least 128; dims already >=128 round up to the MXU depth."""
    d = max(int(d), 1)
    return _round_up(d, 128 if d < 128 else mxu_k)


_ALIGN_B = 16   # batch-tile alignment (sublane-pack friendly for the bf16 output tile)


# ----------------------------------------------------------------------------- kernel
def _cross_modal_kernel(img_ref, txt_ref,
                        wl_ref, bl_ref,
                        wv_ref, bv_ref,
                        wf_l_ref, wf_v_ref, bf_ref,
                        wr_ref, br_ref,
                        wo_ref, bo_ref,
                        logits_ref):
    bf16 = jnp.bfloat16

    # Cast activations to bf16 at the MXU boundary only (inside the kernel, not the wrapper).
    img = img_ref[...].astype(bf16)
    txt = txt_ref[...].astype(bf16)

    # lan_fc: Linear + ReLU on img_features (as in the reference module).
    h_lan = jnp.dot(img, wl_ref[...], preferred_element_type=jnp.float32)
    h_lan = jnp.maximum(h_lan + bl_ref[...], 0.0).astype(bf16)   # single bf16 copy carried

    # vis_fc: Linear + ReLU on txt_features.
    h_vis = jnp.dot(txt, wv_ref[...], preferred_element_type=jnp.float32)
    h_vis = jnp.maximum(h_vis + bv_ref[...], 0.0).astype(bf16)

    # fuse: Linear(concat([h_lan, h_vis], dim=1)) + ReLU.
    # Split matmul == exact concat semantics, no unaligned lane-concat in-kernel.
    fused = (jnp.dot(h_lan, wf_l_ref[...], preferred_element_type=jnp.float32)
             + jnp.dot(h_vis, wf_v_ref[...], preferred_element_type=jnp.float32)
             + bf_ref[...])
    fused = jnp.maximum(fused, 0.0).astype(bf16)
    # dropout: eval-mode identity

    # representation_fc: Linear.
    rep = (jnp.dot(fused, wr_ref[...], preferred_element_type=jnp.float32)
           + br_ref[...]).astype(bf16)
    # dropout: eval-mode identity

    # logits_fc + tanh  (output dim padded to a 128 multiple -> lane-dense, unmasked stores)
    logits = jnp.dot(rep, wo_ref[...], preferred_element_type=jnp.float32) + bo_ref[...]
    logits_ref[...] = jnp.tanh(logits).astype(logits_ref.dtype)


# ----------------------------------------------------------------------------- tiling
def _choose_tile_b(batch, d_lan, d_vis, fusion, c_pad, budget_bytes, num_cores):
    """Largest batch tile (multiple of 16, <=2048) fitting the per-chip VMEM budget,
    capped so v7x gets >=2 grid steps for megacore sharding."""
    # Resident weights: bf16, single-buffered (pl.Buffered(1)) -> accounted 1x.
    weight_bytes = 2 * (d_lan * d_lan + d_vis * d_vis + (d_lan + d_vis) * fusion
                        + fusion * fusion + fusion * c_pad)
    weight_bytes += 4 * 8 * (d_lan + d_vis + 2 * fusion + c_pad)   # f32 (1,N) biases, 8-sublane padded
    # Per-row bytes: double-buffered f32 input tiles + double-buffered bf16 output tile
    # + live bf16 intermediates + one f32 matmul result.
    per_row = (4 * 2 * (d_lan + d_vis)
               + 2 * 2 * c_pad
               + 2 * (d_lan + d_vis + 2 * fusion)
               + 4 * max(d_lan, d_vis, fusion, c_pad))
    avail = budget_bytes - weight_bytes
    if avail < per_row * _ALIGN_B:
        # TODO(synk): K/N-tiled weight fallback (reduction grid axis marked "arbitrary" with an
        # f32 VMEM accumulator + pl.when init/finalize) for fusion dims whose resident weights
        # exceed per-core VMEM (matters most on v7x's 64 MiB); not implemented.
        raise ValueError("CrossModalEncoder weights do not fit the per-core VMEM budget; "
                         "tiled-weight fallback is not implemented.")
    tb = min(2048, avail // max(per_row, 1))
    tb = max(_ALIGN_B, (tb // _ALIGN_B) * _ALIGN_B)
    tb = min(tb, _round_up(max(batch, 1), _ALIGN_B))
    if num_cores > 1 and batch >= 2 * _ALIGN_B:
        # Ensure >= num_cores grid steps so dimension_semantics=("parallel",) actually
        # shards the batch across both v7x TensorCores.
        tb = min(tb, _round_up(pl.cdiv(batch, num_cores), _ALIGN_B))
    return int(tb)


def _const_spec(shape):
    """Weight/bias block: constant index_map, single-buffered (never re-DMA'd)."""
    index_map = lambda i: (0, 0)
    try:
        return pl.BlockSpec(shape, index_map, pipeline_mode=pl.Buffered(1))
    except Exception:
        return pl.BlockSpec(shape, index_map)


# ----------------------------------------------------------------------------- wrapper
def cross_modal_encoder_forward(img_features, txt_features, params,
                                labels=None, loss_fn=None, tile_b=None):
    """Pallas implementation of CrossModalEncoder.forward (eval-mode dropout).

    img_features: (B, in_lan_feature_dim)   [lan_fc is applied here, per the reference]
    txt_features: (B, in_vis_feature_dim)
    params: dict of weights stored (in, out) and biases (1, out).
    Returns (logits_f32[B, num_classes], loss).
    """
    B, d_lan = img_features.shape
    _, d_vis = txt_features.shape
    fusion = params["wr"].shape[0]
    C = params["wo"].shape[1]

    bf16, f32 = jnp.bfloat16, jnp.float32
    mxu_k = _mxu_k_align()
    dL = _pad_feature_dim(d_lan, mxu_k)
    dV = _pad_feature_dim(d_vis, mxu_k)
    Fp = _pad_feature_dim(fusion, mxu_k)
    Cp = _round_up(max(C, 1), 128)        # output-only dim: lane alignment suffices

    # --- zero-padded, lane-dense resident weights (bf16 MXU operands, f32 biases) ---
    def pad_w(w, rows, cols):
        w = jnp.asarray(w, bf16)
        return jnp.zeros((rows, cols), bf16).at[:w.shape[0], :w.shape[1]].set(w)

    def pad_b(b, cols):
        b = jnp.asarray(b, f32).reshape(1, -1)
        return jnp.zeros((1, cols), f32).at[:, :b.shape[1]].set(b)

    wl = pad_w(params["wl"], dL, dL); bl = pad_b(params["bl"], dL)
    wv = pad_w(params["wv"], dV, dV); bv = pad_b(params["bv"], dV)
    wf_l = pad_w(params["wf"][:d_lan], dL, Fp)    # split fuse weight == exact concat semantics
    wf_v = pad_w(params["wf"][d_lan:], dV, Fp)
    bf_ = pad_b(params["bf"], Fp)
    wr = pad_w(params["wr"], Fp, Fp); br = pad_b(params["br"], Fp)
    wo = pad_w(params["wo"], Fp, Cp); bo = pad_b(params["bo"], Cp)

    # --- batch tiling: generation-aware VMEM budget, megacore-aware grid ---
    vmem_limit = _vmem_limit_bytes()
    budget = vmem_limit - 4 * 1024 * 1024          # headroom for compiler scratch
    num_cores = _num_tensorcores()
    tb = int(tile_b) if tile_b is not None else _choose_tile_b(
        B, dL, dV, Fp, Cp, budget, num_cores)
    Bp = _round_up(B, tb)

    img = jnp.pad(img_features, ((0, Bp - B), (0, dL - d_lan)))
    txt = jnp.pad(txt_features, ((0, Bp - B), (0, dV - d_vis)))
    grid = (Bp // tb,)

    def act_spec(d):
        return pl.BlockSpec((tb, d), lambda i: (i, 0))

    weight_bytes = (2 * (dL * dL + dV * dV + (dL + dV) * Fp + Fp * Fp + Fp * Cp)
                    + 4 * (dL + dV + 2 * Fp + Cp))
    in_bytes = img.dtype.itemsize * Bp * dL + txt.dtype.itemsize * Bp * dV
    out_bytes = 2 * Bp * Cp                                     # bf16 output slab
    flops = 2 * Bp * (dL * dL + dV * dV + (dL + dV) * Fp + Fp * Fp + Fp * Cp)

    logits_pad = pl.pallas_call(
        _cross_modal_kernel,
        out_shape=jax.ShapeDtypeStruct((Bp, Cp), jnp.bfloat16),
        grid=grid,
        in_specs=[
            act_spec(dL),               # img tile
            act_spec(dV),               # txt tile
            _const_spec(wl.shape), _const_spec(bl.shape),
            _const_spec(wv.shape), _const_spec(bv.shape),
            _const_spec(wf_l.shape), _const_spec(wf_v.shape), _const_spec(bf_.shape),
            _const_spec(wr.shape), _const_spec(br.shape),
            _const_spec(wo.shape), _const_spec(bo.shape),
        ],
        out_specs=pl.BlockSpec((tb, Cp), lambda i: (i, 0)),
        compiler_params=pltpu.CompilerParams(
            dimension_semantics=("parallel",),     # megacore sharding on v7x (grid >= 2 steps)
            vmem_limit_bytes=int(vmem_limit),
        ),
        cost_estimate=pl.CostEstimate(
            flops=int(flops),
            transcendentals=int(Bp * Cp),          # tanh
            bytes_accessed=int(in_bytes + weight_bytes + out_bytes),
        ),
    )(img, txt, wl, bl, wv, bv, wf_l, wf_v, bf_, wr, br, wo, bo)

    logits = logits_pad[:B, :C].astype(jnp.float32)
    loss = loss_fn(logits, labels) if (labels is not None and loss_fn is not None) else None
    return logits, loss


# ----------------------------------------------------------------------------- init + demo
def init_params(key, in_lan_dim, in_vis_dim, out_fusion_dim, num_classes):
    """Deterministic init. Weights (in, out) in bf16; biases (1, out) in f32."""
    ks = jax.random.split(key, 10)
    s = 0.05

    def w(k, shape):
        return (s * jax.random.normal(k, shape, jnp.float32)).astype(jnp.bfloat16)

    def b(k, shape):
        return s * jax.random.normal(k, shape, jnp.float32)

    return {
        "wl": w(ks[0], (in_lan_dim, in_lan_dim)),
        "bl": b(ks[1], (1, in_lan_dim)),
        "wv": w(ks[2], (in_vis_dim, in_vis_dim)),
        "bv": b(ks[3], (1, in_vis_dim)),
        "wf": w(ks[4], (in_lan_dim + in_vis_dim, out_fusion_dim)),
        "bf": b(ks[5], (1, out_fusion_dim)),
        "wr": w(ks[6], (out_fusion_dim, out_fusion_dim)),
        "br": b(ks[7], (1, out_fusion_dim)),
        "wo": w(ks[8], (out_fusion_dim, num_classes)),
        "bo": b(ks[9], (1, num_classes)),
    }


if __name__ == "__main__":
    # Small shapes consistent with the module's forward.
    B = 8
    IN_LAN = 32      # in_lan_feature_dim (dim of img_features, per reference code)
    IN_VIS = 32      # in_vis_feature_dim (dim of txt_features)
    FUSION = 32      # out_fusion_dim
    NUM_CLASSES = 8

    key = jax.random.PRNGKey(0)
    k_img, k_txt, k_params = jax.random.split(key, 3)

    img_features = jax.random.normal(k_img, (B, IN_LAN), jnp.float32)
    txt_features = jax.random.normal(k_txt, (B, IN_VIS), jnp.float32)
    params = init_params(k_params, IN_LAN, IN_VIS, FUSION, NUM_CLASSES)

    # labels=None path of the reference forward -> loss is None.
    logits, loss = cross_modal_encoder_forward(img_features, txt_features, params, labels=None)
    logits = jax.block_until_ready(logits)

    assert logits.shape == (B, NUM_CLASSES)
    assert loss is None
    assert bool(jnp.all(jnp.isfinite(logits)))
    print("KERNEL_OK")
</pallas_src>

<mosaic_0001>
module attributes {stable_mosaic.version = 11 : i64} {
  func.func @_cross_modal_kernel(%arg0: i32, %arg1: memref<16x128xf32, #tpu.memory_space<vmem>>, %arg2: memref<16x128xf32, #tpu.memory_space<vmem>>, %arg3: memref<128x128xbf16, #tpu.memory_space<vmem>>, %arg4: memref<1x128xf32, #tpu.memory_space<vmem>>, %arg5: memref<128x128xbf16, #tpu.memory_space<vmem>>, %arg6: memref<1x128xf32, #tpu.memory_space<vmem>>, %arg7: memref<128x128xbf16, #tpu.memory_space<vmem>>, %arg8: memref<128x128xbf16, #tpu.memory_space<vmem>>, %arg9: memref<1x128xf32, #tpu.memory_space<vmem>>, %arg10: memref<128x128xbf16, #tpu.memory_space<vmem>>, %arg11: memref<1x128xf32, #tpu.memory_space<vmem>>, %arg12: memref<128x128xbf16, #tpu.memory_space<vmem>>, %arg13: memref<1x128xf32, #tpu.memory_space<vmem>>, %arg14: memref<16x128xbf16, #tpu.memory_space<vmem>>) attributes {dimension_semantics = [#tpu.dimension_semantics<parallel>], iteration_bounds = array<i64: 1>, scalar_prefetch = 0 : i64, scratch_operands = 0 : i64, tpu.core_type = #tpu.core_type<tc>, window_params = [{transform_indices = @transform_0, window_bounds = array<i64: 16, 128>}, {transform_indices = @transform_1, window_bounds = array<i64: 16, 128>}, {pipeline_mode = #tpu.pipeline_mode<synchronous>, transform_indices = @transform_2, window_bounds = array<i64: 128, 128>}, {pipeline_mode = #tpu.pipeline_mode<synchronous>, transform_indices = @transform_3, window_bounds = array<i64: 1, 128>}, {pipeline_mode = #tpu.pipeline_mode<synchronous>, transform_indices = @transform_4, window_bounds = array<i64: 128, 128>}, {pipeline_mode = #tpu.pipeline_mode<synchronous>, transform_indices = @transform_5, window_bounds = array<i64: 1, 128>}, {pipeline_mode = #tpu.pipeline_mode<synchronous>, transform_indices = @transform_6, window_bounds = array<i64: 128, 128>}, {pipeline_mode = #tpu.pipeline_mode<synchronous>, transform_indices = @transform_7, window_bounds = array<i64: 128, 128>}, {pipeline_mode = #tpu.pipeline_mode<synchronous>, transform_indices = @transform_8, window_bounds = array<i64: 1, 128>}, {pipeline_mode = #tpu.pipeline_mode<synchronous>, transform_indices = @transform_9, window_bounds = array<i64: 128, 128>}, {pipeline_mode = #tpu.pipeline_mode<synchronous>, transform_indices = @transform_10, window_bounds = array<i64: 1, 128>}, {pipeline_mode = #tpu.pipeline_mode<synchronous>, transform_indices = @transform_11, window_bounds = array<i64: 128, 128>}, {pipeline_mode = #tpu.pipeline_mode<synchronous>, transform_indices = @transform_12, window_bounds = array<i64: 1, 128>}, {transform_indices = @transform_13, window_bounds = array<i64: 16, 128>}]} {
    %c0 = arith.constant 0 : index
    %c0_0 = arith.constant 0 : index
    %0 = vector.load %arg1[%c0, %c0_0] : memref<16x128xf32, #tpu.memory_space<vmem>>, vector<16x128xf32>
    %1 = arith.truncf %0 : vector<16x128xf32> to vector<16x128xbf16>
    %c0_1 = arith.constant 0 : index
    %c0_2 = arith.constant 0 : index
    %2 = vector.load %arg2[%c0_1, %c0_2] : memref<16x128xf32, #tpu.memory_space<vmem>>, vector<16x128xf32>
    %3 = arith.truncf %2 : vector<16x128xf32> to vector<16x128xbf16>
    %c0_3 = arith.constant 0 : index
    %c0_4 = arith.constant 0 : index
    %4 = vector.load %arg3[%c0_3, %c0_4] : memref<128x128xbf16, #tpu.memory_space<vmem>>, vector<128x128xbf16>
    %cst = arith.constant dense<0.000000e+00> : vector<16x128xf32>
    %5 = tpu.matmul %1, %4, %cst {dimension_numbers = #tpu.dot_dimension_numbers<[1], [0], [0], [1], [0, 0, 1, 1], [], []>} : vector<16x128xbf16>, vector<128x128xbf16>, vector<16x128xf32> -> vector<16x128xf32>
    %c0_5 = arith.constant 0 : index
    %c0_6 = arith.constant 0 : index
    %6 = vector.load %arg4[%c0_5, %c0_6] : memref<1x128xf32, #tpu.memory_space<vmem>>, vector<1x128xf32>
    %7 = vector.broadcast %6 : vector<1x128xf32> to vector<16x128xf32>
    %8 = arith.addf %5, %7 : vector<16x128xf32>
    %cst_7 = arith.constant 0.000000e+00 : f32
    %9 = vector.broadcast %cst_7 : f32 to vector<16x128xf32>
    %10 = arith.maximumf %8, %9 : vector<16x128xf32>
    %11 = arith.truncf %10 : vector<16x128xf32> to vector<16x128xbf16>
    %c0_8 = arith.constant 0 : index
    %c0_9 = arith.constant 0 : index
    %12 = vector.load %arg5[%c0_8, %c0_9] : memref<128x128xbf16, #tpu.memory_space<vmem>>, vector<128x128xbf16>
    %cst_10 = arith.constant dense<0.000000e+00> : vector<16x128xf32>
    %13 = tpu.matmul %3, %12, %cst_10 {dimension_numbers = #tpu.dot_dimension_numbers<[1], [0], [0], [1], [0, 0, 1, 1], [], []>} : vector<16x128xbf16>, vector<128x128xbf16>, vector<16x128xf32> -> vector<16x128xf32>
    %c0_11 = arith.constant 0 : index
    %c0_12 = arith.constant 0 : index
    %14 = vector.load %arg6[%c0_11, %c0_12] : memref<1x128xf32, #tpu.memory_space<vmem>>, vector<1x128xf32>
    %15 = vector.broadcast %14 : vector<1x128xf32> to vector<16x128xf32>
    %16 = arith.addf %13, %15 : vector<16x128xf32>
    %cst_13 = arith.constant 0.000000e+00 : f32
    %17 = vector.broadcast %cst_13 : f32 to vector<16x128xf32>
    %18 = arith.maximumf %16, %17 : vector<16x128xf32>
    %19 = arith.truncf %18 : vector<16x128xf32> to vector<16x128xbf16>
    %c0_14 = arith.constant 0 : index
    %c0_15 = arith.constant 0 : index
    %20 = vector.load %arg7[%c0_14, %c0_15] : memref<128x128xbf16, #tpu.memory_space<vmem>>, vector<128x128xbf16>
    %cst_16 = arith.constant dense<0.000000e+00> : vector<16x128xf32>
    %21 = tpu.matmul %11, %20, %cst_16 {dimension_numbers = #tpu.dot_dimension_numbers<[1], [0], [0], [1], [0, 0, 1, 1], [], []>} : vector<16x128xbf16>, vector<128x128xbf16>, vector<16x128xf32> -> vector<16x128xf32>
    %c0_17 = arith.constant 0 : index
    %c0_18 = arith.constant 0 : index
    %22 = vector.load %arg8[%c0_17, %c0_18] : memref<128x128xbf16, #tpu.memory_space<vmem>>, vector<128x128xbf16>
    %cst_19 = arith.constant dense<0.000000e+00> : vector<16x128xf32>
    %23 = tpu.matmul %19, %22, %cst_19 {dimension_numbers = #tpu.dot_dimension_numbers<[1], [0], [0], [1], [0, 0, 1, 1], [], []>} : vector<16x128xbf16>, vector<128x128xbf16>, vector<16x128xf32> -> vector<16x128xf32>
    %24 = arith.addf %21, %23 : vector<16x128xf32>
    %c0_20 = arith.constant 0 : index
    %c0_21 = arith.constant 0 : index
    %25 = vector.load %arg9[%c0_20, %c0_21] : memref<1x128xf32, #tpu.memory_space<vmem>>, vector<1x128xf32>
    %26 = vector.broadcast %25 : vector<1x128xf32> to vector<16x128xf32>
    %27 = arith.addf %24, %26 : vector<16x128xf32>
    %cst_22 = arith.constant 0.000000e+00 : f32
    %28 = vector.broadcast %cst_22 : f32 to vector<16x128xf32>
    %29 = arith.maximumf %27, %28 : vector<16x128xf32>
    %30 = arith.truncf %29 : vector<16x128xf32> to vector<16x128xbf16>
    %c0_23 = arith.constant 0 : index
    %c0_24 = arith.constant 0 : index
    %31 = vector.load %arg10[%c0_23, %c0_24] : memref<128x128xbf16, #tpu.memory_space<vmem>>, vector<128x128xbf16>
    %cst_25 = arith.constant dense<0.000000e+00> : vector<16x128xf32>
    %32 = tpu.matmul %30, %31, %cst_25 {dimension_numbers = #tpu.dot_dimension_numbers<[1], [0], [0], [1], [0, 0, 1, 1], [], []>} : vector<16x128xbf16>, vector<128x128xbf16>, vector<16x128xf32> -> vector<16x128xf32>
    %c0_26 = arith.constant 0 : index
    %c0_27 = arith.constant 0 : index
    %33 = vector.load %arg11[%c0_26, %c0_27] : memref<1x128xf32, #tpu.memory_space<vmem>>, vector<1x128xf32>
    %34 = vector.broadcast %33 : vector<1x128xf32> to vector<16x128xf32>
    %35 = arith.addf %32, %34 : vector<16x128xf32>
    %36 = arith.truncf %35 : vector<16x128xf32> to vector<16x128xbf16>
    %c0_28 = arith.constant 0 : index
    %c0_29 = arith.constant 0 : index
    %37 = vector.load %arg12[%c0_28, %c0_29] : memref<128x128xbf16, #tpu.memory_space<vmem>>, vector<128x128xbf16>
    %cst_30 = arith.constant dense<0.000000e+00> : vector<16x128xf32>
    %38 = tpu.matmul %36, %37, %cst_30 {dimension_numbers = #tpu.dot_dimension_numbers<[1], [0], [0], [1], [0, 0, 1, 1], [], []>} : vector<16x128xbf16>, vector<128x128xbf16>, vector<16x128xf32> -> vector<16x128xf32>
    %c0_31 = arith.constant 0 : index
    %c0_32 = arith.constant 0 : index
    %39 = vector.load %arg13[%c0_31, %c0_32] : memref<1x128xf32, #tpu.memory_space<vmem>>, vector<1x128xf32>
    %40 = vector.broadcast %39 : vector<1x128xf32> to vector<16x128xf32>
    %41 = arith.addf %38, %40 : vector<16x128xf32>
    %42 = math.tanh %41 : vector<16x128xf32>
    %43 = arith.truncf %42 : vector<16x128xf32> to vector<16x128xbf16>
    %c0_33 = arith.constant 0 : index
    %c0_34 = arith.constant 0 : index
    %44 = vector.load %arg14[%c0_33, %c0_34] : memref<16x128xbf16, #tpu.memory_space<vmem>>, vector<16x128xbf16>
    tpu.vector_store %arg14[%c0_33, %c0_34], %43 {strides = array<i32>} : memref<16x128xbf16, #tpu.memory_space<vmem>>, vector<16x128xbf16>,
    return
  }
  func.func @transform_0(%arg0: i32) -> (i32, i32) {
    %c0_i32 = arith.constant 0 : i32
    %c0_i32_0 = arith.constant 0 : i32
    return %arg0, %c0_i32 : i32, i32
  }
  func.func @transform_1(%arg0: i32) -> (i32, i32) {
    %c0_i32 = arith.constant 0 : i32
    %c0_i32_0 = arith.constant 0 : i32
    return %arg0, %c0_i32 : i32, i32
  }
  func.func @transform_2(%arg0: i32) -> (i32, i32) {
    %c0_i32 = arith.constant 0 : i32
    %c0_i32_0 = arith.constant 0 : i32
    %c0_i32_1 = arith.constant 0 : i32
    return %c0_i32, %c0_i32_0 : i32, i32
  }
  func.func @transform_3(%arg0: i32) -> (i32, i32) {
    %c0_i32 = arith.constant 0 : i32
    %c0_i32_0 = arith.constant 0 : i32
    %c0_i32_1 = arith.constant 0 : i32
    return %c0_i32, %c0_i32_0 : i32, i32
  }
  func.func @transform_4(%arg0: i32) -> (i32, i32) {
    %c0_i32 = arith.constant 0 : i32
    %c0_i32_0 = arith.constant 0 : i32
    %c0_i32_1 = arith.constant 0 : i32
    return %c0_i32, %c0_i32_0 : i32, i32
  }
  func.func @transform_5(%arg0: i32) -> (i32, i32) {
    %c0_i32 = arith.constant 0 : i32
    %c0_i32_0 = arith.constant 0 : i32
    %c0_i32_1 = arith.constant 0 : i32
    return %c0_i32, %c0_i32_0 : i32, i32
  }
  func.func @transform_6(%arg0: i32) -> (i32, i32) {
    %c0_i32 = arith.constant 0 : i32
    %c0_i32_0 = arith.constant 0 : i32
    %c0_i32_1 = arith.constant 0 : i32
    return %c0_i32, %c0_i32_0 : i32, i32
  }
  func.func @transform_7(%arg0: i32) -> (i32, i32) {
    %c0_i32 = arith.constant 0 : i32
    %c0_i32_0 = arith.constant 0 : i32
    %c0_i32_1 = arith.constant 0 : i32
    return %c0_i32, %c0_i32_0 : i32, i32
  }
  func.func @transform_8(%arg0: i32) -> (i32, i32) {
    %c0_i32 = arith.constant 0 : i32
    %c0_i32_0 = arith.constant 0 : i32
    %c0_i32_1 = arith.constant 0 : i32
    return %c0_i32, %c0_i32_0 : i32, i32
  }
  func.func @transform_9(%arg0: i32) -> (i32, i32) {
    %c0_i32 = arith.constant 0 : i32
    %c0_i32_0 = arith.constant 0 : i32
    %c0_i32_1 = arith.constant 0 : i32
    return %c0_i32, %c0_i32_0 : i32, i32
  }
  func.func @transform_10(%arg0: i32) -> (i32, i32) {
    %c0_i32 = arith.constant 0 : i32
    %c0_i32_0 = arith.constant 0 : i32
    %c0_i32_1 = arith.constant 0 : i32
    return %c0_i32, %c0_i32_0 : i32, i32
  }
  func.func @transform_11(%arg0: i32) -> (i32, i32) {
    %c0_i32 = arith.constant 0 : i32
    %c0_i32_0 = arith.constant 0 : i32
    %c0_i32_1 = arith.constant 0 : i32
    return %c0_i32, %c0_i32_0 : i32, i32
  }
  func.func @transform_12(%arg0: i32) -> (i32, i32) {
    %c0_i32 = arith.constant 0 : i32
    %c0_i32_0 = arith.constant 0 : i32
    %c0_i32_1 = arith.constant 0 : i32
    return %c0_i32, %c0_i32_0 : i32, i32
  }
  func.func @transform_13(%arg0: i32) -> (i32, i32) {
    %c0_i32 = arith.constant 0 : i32
    %c0_i32_0 = arith.constant 0 : i32
    return %arg0, %c0_i32 : i32, i32
  }
}

</mosaic_0001>

<llo_original>
// kernel: tpu_custom_call.1
$region0: #{tpu_custom_call.1}
  #allocation0 [shape = 'u32[]', space=smem, size = 0x4, offset = 0x4, fixed_abs, tag = 'smem constant byte address 0x4 - core index']
  #allocation1 [shape = 'u32[144,128]{1,0:T(1,128)}', space=vmem, size = 0x12000, scoped, tag = 'internal scratch']
  %s0 = inlined_call_operand.hbm [shape: f32[16,128], index: 0, kind: input, shape index: {}]
  %s1 = inlined_call_operand.hbm [shape: f32[16,128], index: 1, kind: input, shape index: {}]
  %s2 = inlined_call_operand.hbm [shape: bf16[128,128], index: 2, kind: input, shape index: {}]
  %s3 = inlined_call_operand.vmem [shape: f32[1,128], index: 3, kind: input, shape index: {}]
  %s4 = inlined_call_operand.hbm [shape: bf16[128,128], index: 4, kind: input, shape index: {}]
  %s5 = inlined_call_operand.vmem [shape: f32[1,128], index: 5, kind: input, shape index: {}]
  %s6 = inlined_call_operand.hbm [shape: bf16[128,128], index: 6, kind: input, shape index: {}]
  %s7 = inlined_call_operand.hbm [shape: bf16[128,128], index: 7, kind: input, shape index: {}]
  %s8 = inlined_call_operand.vmem [shape: f32[1,128], index: 8, kind: input, shape index: {}]
  %s9 = inlined_call_operand.hbm [shape: bf16[128,128], index: 9, kind: input, shape index: {}]
  %s10 = inlined_call_operand.vmem [shape: f32[1,128], index: 10, kind: input, shape index: {}]
  %s11 = inlined_call_operand.hbm [shape: bf16[128,128], index: 11, kind: input, shape index: {}]
  %s12 = inlined_call_operand.vmem [shape: f32[1,128], index: 12, kind: input, shape index: {}]
  %s13 = inlined_call_operand.hbm [shape: bf16[16,128], index: 13, kind: output, shape index: {}]
  %s14 = sld [smem:[#allocation0]]
  $region94: #{tpu_custom_call.1} parent=0
    _
  %s16 = ssub.s32 1, %s14
  %s17 = scalar_select 0, %s16, %s14
  $region1: #{tpu_custom_call.1} parent=0
    #allocation2 [shape = 'u8[8192]{0}', space=vmem, size = 0x2000, scoped, tag = 'input window, operand 0, single buffered']
    #allocation3 [shape = 's32[1]{0}', space=sflag, size = 0x4, scoped, tag = 'scoped memory for tpu_custom_call.1']
    #allocation4 [shape = 's32[1]{0}', space=sflag, size = 0x4, scoped, tag = 'scoped memory for tpu_custom_call.1']
    #allocation5 [shape = 'u8[8192]{0}', space=vmem, size = 0x2000, scoped, tag = 'input window, operand 1, single buffered']
    #allocation6 [shape = 's32[1]{0}', space=sflag, size = 0x4, scoped, tag = 'scoped memory for tpu_custom_call.1']
    #allocation7 [shape = 'u8[32768]{0}', space=vmem, size = 0x8000, scoped, tag = 'input window, operand 2, single buffered']
    #allocation8 [shape = 'u8[32768]{0}', space=vmem, size = 0x8000, scoped, tag = 'input window, operand 4, single buffered']
    #allocation9 [shape = 's32[1]{0}', space=sflag, size = 0x4, scoped, tag = 'scoped memory for tpu_custom_call.1']
    #allocation10 [shape = 'u8[32768]{0}', space=vmem, size = 0x8000, scoped, tag = 'input window, operand 6, single buffered']
    #allocation11 [shape = 'u8[32768]{0}', space=vmem, size = 0x8000, scoped, tag = 'input window, operand 7, single buffered']
    #allocation12 [shape = 's32[1]{0}', space=sflag, size = 0x4, scoped, tag = 'scoped memory for tpu_custom_call.1']
    #allocation13 [shape = 'u8[32768]{0}', space=vmem, size = 0x8000, scoped, tag = 'input window, operand 9, single buffered']
    #allocation14 [shape = 'u8[32768]{0}', space=vmem, size = 0x8000, scoped, tag = 'input window, operand 11, single buffered']
    #allocation15 [shape = 's32[1]{0}', space=sflag, size = 0x4, scoped, tag = 'scoped memory for tpu_custom_call.1']
    #allocation16 [shape = 'u8[4096]{0}', space=vmem, size = 0x1000, scoped, tag = 'output window, operand 0, single buffered']
    %18 = vsyncpa [#allocation3], 0
    %19 = vsyncpa [#allocation6], 0
    %20 = vsyncpa [#allocation9], 0
    %21 = vsyncpa [#allocation12], 0
    %22 = vsyncpa [#allocation15], 0
    %23 = vsyncpa [#allocation4], 0
    // Predicated region
    $region2: #{tpu_custom_call.1} parent=1 // pred_check
      _
    $region3: #{tpu_custom_call.1} parent=1 // pred_check_branch
      %25 = sbr.rel (0) target = $region5
    $region4: #{tpu_custom_call.1} parent=1 // pred_region
      %s27 = ssub.s32 256, 256
      %28 = vsyncadd [#allocation3], %s27
      %s29 = sshll.u32 [#allocation2], 4
      %s30 = int_to_ptr.vmem [resolvable:$true] %s29
      %35 = dma.hbm_to_vmem [thread:$0]  %s0, 256, %s30, [#allocation3], 128, 128, 8
    $region5: #{tpu_custom_call.1} parent=1 // pred_fallthru
      _
    // Predicated region
    $region6: #{tpu_custom_call.1} parent=1 // pred_check
      _
    $region7: #{tpu_custom_call.1} parent=1 // pred_check_branch
      %37 = sbr.rel (0) target = $region9
    $region8: #{tpu_custom_call.1} parent=1 // pred_region
      %s39 = ssub.s32 256, 256
      %40 = vsyncadd [#allocation6], %s39
      %s41 = sshll.u32 [#allocation5], 4
      %s42 = int_to_ptr.vmem [resolvable:$true] %s41
      %47 = dma.hbm_to_vmem [thread:$0]  %s1, 256, %s42, [#allocation6], 128, 128, 8
    $region9: #{tpu_custom_call.1} parent=1 // pred_fallthru
      _
    // Predicated region
    $region10: #{tpu_custom_call.1} parent=1 // pred_check
      _
    $region11: #{tpu_custom_call.1} parent=1 // pred_check_branch
      %49 = sbr.rel (0) target = $region13
    $region12: #{tpu_custom_call.1} parent=1 // pred_region
      %s51 = ssub.s32 1024, 1024
      %52 = vsyncadd [#allocation6], %s51
      %s53 = sshll.u32 [#allocation7], 4
      %s54 = int_to_ptr.vmem [resolvable:$true] %s53
      %59 = dma.hbm_to_vmem [thread:$0]  %s2, 1024, %s54, [#allocation6], 64, 64, 4
    $region13: #{tpu_custom_call.1} parent=1 // pred_fallthru
      _
    // Predicated region
    $region14: #{tpu_custom_call.1} parent=1 // pred_check
      _
    $region15: #{tpu_custom_call.1} parent=1 // pred_check_branch
      %61 = sbr.rel (0) target = $region17
    $region16: #{tpu_custom_call.1} parent=1 // pred_region
      _
    $region17: #{tpu_custom_call.1} parent=1 // pred_fallthru
      _
    // Predicated region
    $region18: #{tpu_custom_call.1} parent=1 // pred_check
      _
    $region19: #{tpu_custom_call.1} parent=1 // pred_check_branch
      %63 = sbr.rel (0) target = $region21
    $region20: #{tpu_custom_call.1} parent=1 // pred_region
      %s65 = ssub.s32 1024, 1024
      %66 = vsyncadd [#allocation9], %s65
      %s67 = sshll.u32 [#allocation8], 4
      %s68 = int_to_ptr.vmem [resolvable:$true] %s67
      %73 = dma.hbm_to_vmem [thread:$0]  %s4, 1024, %s68, [#allocation9], 64, 64, 4
    $region21: #{tpu_custom_call.1} parent=1 // pred_fallthru
      _
    // Predicated region
    $region22: #{tpu_custom_call.1} parent=1 // pred_check
      _
    $region23: #{tpu_custom_call.1} parent=1 // pred_check_branch
      %75 = sbr.rel (0) target = $region25
    $region24: #{tpu_custom_call.1} parent=1 // pred_region
      _
    $region25: #{tpu_custom_call.1} parent=1 // pred_fallthru
      _
    // Predicated region
    $region26: #{tpu_custom_call.1} parent=1 // pred_check
      _
    $region27: #{tpu_custom_call.1} parent=1 // pred_check_branch
      %77 = sbr.rel (0) target = $region29
    $region28: #{tpu_custom_call.1} parent=1 // pred_region
      %s79 = ssub.s32 1024, 1024
      %80 = vsyncadd [#allocation9], %s79
      %s81 = sshll.u32 [#allocation10], 4
      %s82 = int_to_ptr.vmem [resolvable:$true] %s81
      %87 = dma.hbm_to_vmem [thread:$0]  %s6, 1024, %s82, [#allocation9], 64, 64, 4
    $region29: #{tpu_custom_call.1} parent=1 // pred_fallthru
      _
    // Predicated region
    $region30: #{tpu_custom_call.1} parent=1 // pred_check
      _
    $region31: #{tpu_custom_call.1} parent=1 // pred_check_branch
      %89 = sbr.rel (0) target = $region33
    $region32: #{tpu_custom_call.1} parent=1 // pred_region
      %s91 = ssub.s32 1024, 1024
      %92 = vsyncadd [#allocation12], %s91
      %s93 = sshll.u32 [#allocation11], 4
      %s94 = int_to_ptr.vmem [resolvable:$true] %s93
      %99 = dma.hbm_to_vmem [thread:$0]  %s7, 1024, %s94, [#allocation12], 64, 64, 4
    $region33: #{tpu_custom_call.1} parent=1 // pred_fallthru
      _
    // Predicated region
    $region34: #{tpu_custom_call.1} parent=1 // pred_check
      _
    $region35: #{tpu_custom_call.1} parent=1 // pred_check_branch
      %101 = sbr.rel (0) target = $region37
    $region36: #{tpu_custom_call.1} parent=1 // pred_region
      _
    $region37: #{tpu_custom_call.1} parent=1 // pred_fallthru
      _
    // Predicated region
    $region38: #{tpu_custom_call.1} parent=1 // pred_check
      _
    $region39: #{tpu_custom_call.1} parent=1 // pred_check_branch
      %103 = sbr.rel (0) target = $region41
    $region40: #{tpu_custom_call.1} parent=1 // pred_region
      %s105 = ssub.s32 1024, 1024
      %106 = vsyncadd [#allocation12], %s105
      %s107 = sshll.u32 [#allocation13], 4
      %s108 = int_to_ptr.vmem [resolvable:$true] %s107
      %113 = dma.hbm_to_vmem [thread:$0]  %s9, 1024, %s108, [#allocation12], 64, 64, 4
    $region41: #{tpu_custom_call.1} parent=1 // pred_fallthru
      _
    // Predicated region
    $region42: #{tpu_custom_call.1} parent=1 // pred_check
      _
    $region43: #{tpu_custom_call.1} parent=1 // pred_check_branch
      %115 = sbr.rel (0) target = $region45
    $region44: #{tpu_custom_call.1} parent=1 // pred_region
      _
    $region45: #{tpu_custom_call.1} parent=1 // pred_fallthru
      _
    // Predicated region
    $region46: #{tpu_custom_call.1} parent=1 // pred_check
      _
    $region47: #{tpu_custom_call.1} parent=1 // pred_check_branch
      %117 = sbr.rel (0) target = $region49
    $region48: #{tpu_custom_call.1} parent=1 // pred_region
      %s119 = ssub.s32 1024, 1024
      %120 = vsyncadd [#allocation15], %s119
      %s121 = sshll.u32 [#allocation14], 4
      %s122 = int_to_ptr.vmem [resolvable:$true] %s121
      %127 = dma.hbm_to_vmem [thread:$0]  %s11, 1024, %s122, [#allocation15], 64, 64, 4
    $region49: #{tpu_custom_call.1} parent=1 // pred_fallthru
      _
    // Predicated region
    $region50: #{tpu_custom_call.1} parent=1 // pred_check
      _
    $region51: #{tpu_custom_call.1} parent=1 // pred_check_branch
      %129 = sbr.rel (0) target = $region53
    $region52: #{tpu_custom_call.1} parent=1 // pred_region
      _
    $region53: #{tpu_custom_call.1} parent=1 // pred_fallthru
      _
    // Predicated region
    $region54: #{tpu_custom_call.1} parent=1 // pred_check
      _
    $region55: #{tpu_custom_call.1} parent=1 // pred_check_branch
      %131 = sbr.rel (0) target = $region57
    $region56: #{tpu_custom_call.1} parent=1 // pred_region
      %132 = dma.done [#allocation3], 256
    $region57: #{tpu_custom_call.1} parent=1 // pred_fallthru
      _
    // Predicated region
    $region58: #{tpu_custom_call.1} parent=1 // pred_check
      _
    $region59: #{tpu_custom_call.1} parent=1 // pred_check_branch
      %134 = sbr.rel (0) target = $region61
    $region60: #{tpu_custom_call.1} parent=1 // pred_region
      %135 = dma.done [#allocation6], 256
    $region61: #{tpu_custom_call.1} parent=1 // pred_fallthru
      _
    // Predicated region
    $region62: #{tpu_custom_call.1} parent=1 // pred_check
      _
    $region63: #{tpu_custom_call.1} parent=1 // pred_check_branch
      %137 = sbr.rel (0) target = $region65
    $region64: #{tpu_custom_call.1} parent=1 // pred_region
      %138 = dma.done [#allocation6], 1024
    $region65: #{tpu_custom_call.1} parent=1 // pred_fallthru
      _
    // Predicated region
    $region66: #{tpu_custom_call.1} parent=1 // pred_check
      _
    $region67: #{tpu_custom_call.1} parent=1 // pred_check_branch
      %140 = sbr.rel (0) target = $region69
    $region68: #{tpu_custom_call.1} parent=1 // pred_region
      %141 = dma.done [#allocation9], 1024
    $region69: #{tpu_custom_call.1} parent=1 // pred_fallthru
      _
    // Predicated region
    $region70: #{tpu_custom_call.1} parent=1 // pred_check
      _
    $region71: #{tpu_custom_call.1} parent=1 // pred_check_branch
      %143 = sbr.rel (0) target = $region73
    $region72: #{tpu_custom_call.1} parent=1 // pred_region
      %144 = dma.done [#allocation9], 1024
    $region73: #{tpu_custom_call.1} parent=1 // pred_fallthru
      _
    // Predicated region
    $region74: #{tpu_custom_call.1} parent=1 // pred_check
      _
    $region75: #{tpu_custom_call.1} parent=1 // pred_check_branch
      %146 = sbr.rel (0) target = $region77
    $region76: #{tpu_custom_call.1} parent=1 // pred_region
      %147 = dma.done [#allocation12], 1024
    $region77: #{tpu_custom_call.1} parent=1 // pred_fallthru
      _
    // Predicated region
    $region78: #{tpu_custom_call.1} parent=1 // pred_check
      _
    $region79: #{tpu_custom_call.1} parent=1 // pred_check_branch
      %149 = sbr.rel (0) target = $region81
    $region80: #{tpu_custom_call.1} parent=1 // pred_region
      %150 = dma.done [#allocation12], 1024
    $region81: #{tpu_custom_call.1} parent=1 // pred_fallthru
      _
    // Predicated region
    $region82: #{tpu_custom_call.1} parent=1 // pred_check
      _
    $region83: #{tpu_custom_call.1} parent=1 // pred_check_branch
      %152 = sbr.rel (0) target = $region85
    $region84: #{tpu_custom_call.1} parent=1 // pred_region
      %153 = dma.done [#allocation15], 1024
    $region85: #{tpu_custom_call.1} parent=1 // pred_fallthru
      _
    %v155 = vld [vmem:[#allocation2] sm:$0xff]
    %v156 = vld [vmem:[#allocation2 + $0x8] sm:$0xff]
    %v157 = vpack.c.bf16 %v156, %v155
    %v158 = vld [vmem:[#allocation5] sm:$0xff]
    %v159 = vld [vmem:[#allocation5 + $0x8] sm:$0xff]
    %v160 = vpack.c.bf16 %v159, %v158
    %v161 = vld [vmem:[#allocation7] sm:$0xf]
    %v162 = vld [vmem:[#allocation7 + $0x4] sm:$0xf]
    %v163 = vld [vmem:[#allocation7 + $0x8] sm:$0xf]
    %v164 = vld [vmem:[#allocation7 + $0xc] sm:$0xf]
    %v165 = vld [vmem:[#allocation7 + $0x10] sm:$0xf]
    %v166 = vld [vmem:[#allocation7 + $0x14] sm:$0xf]
    %v167 = vld [vmem:[#allocation7 + $0x18] sm:$0xf]
    %v168 = vld [vmem:[#allocation7 + $0x1c] sm:$0xf]
    %v169 = vld [vmem:[#allocation7 + $0x20] sm:$0xf]
    %v170 = vld [vmem:[#allocation7 + $0x24] sm:$0xf]
    %v171 = vld [vmem:[#allocation7 + $0x28] sm:$0xf]
    %v172 = vld [vmem:[#allocation7 + $0x2c] sm:$0xf]
    %v173 = vld [vmem:[#allocation7 + $0x30] sm:$0xf]
    %v174 = vld [vmem:[#allocation7 + $0x34] sm:$0xf]
    %v175 = vld [vmem:[#allocation7 + $0x38] sm:$0xf]
    %v176 = vld [vmem:[#allocation7 + $0x3c] sm:$0xf]
    %v177 = vld [vmem:[%s3] sm:$0x1]
    %v179 = vlaneseq
    %v180 = vshrl.u32 %v179, 7
    %v181 = vsub.s32 0, %v180
    %v182 = vrot.slane %v177, %v181
    %v200 = vunpack.c.l.b16 %v161
    %v201 = vunpack.c.l.b16 %v162
    %v202 = vunpack.c.l.b16 %v163
    %v203 = vunpack.c.l.b16 %v164
    %v204 = vunpack.c.l.b16 %v165
    %v205 = vunpack.c.l.b16 %v166
    %v206 = vunpack.c.l.b16 %v167
    %v207 = vunpack.c.l.b16 %v168
    %v208 = vunpack.c.l.b16 %v169
    %v209 = vunpack.c.l.b16 %v170
    %v210 = vunpack.c.l.b16 %v171
    %v211 = vunpack.c.l.b16 %v172
    %v212 = vunpack.c.l.b16 %v173
    %v213 = vunpack.c.l.b16 %v174
    %v214 = vunpack.c.l.b16 %v175
    %v215 = vunpack.c.l.b16 %v176
    %v216 = vpack.c.b16 %v201, %v200
    %v217 = vpack.c.b16 %v203, %v202
    %v218 = vpack.c.b16 %v205, %v204
    %v219 = vpack.c.b16 %v207, %v206
    %v220 = vpack.c.b16 %v209, %v208
    %v221 = vpack.c.b16 %v211, %v210
    %v222 = vpack.c.b16 %v213, %v212
    %v223 = vpack.c.b16 %v215, %v214
    %232 = vmatprep.subr.bf16.mxu0 0
    %233 = vmatpush1.bf16.msra.mxu0 %v223
    %234 = vmatprep.subr.bf16.mxu0 0
    %235 = vmatpush1.bf16.msra.mxu0 %v222
    %236 = vmatprep.subr.bf16.mxu0 0
    %237 = vmatpush1.bf16.msra.mxu0 %v221
    %238 = vmatprep.subr.bf16.mxu0 0
    %239 = vmatpush1.bf16.msra.mxu0 %v220
    %240 = vmatprep.subr.bf16.mxu0 0
    %241 = vmatpush1.bf16.msra.mxu0 %v219
    %242 = vmatprep.subr.bf16.mxu0 0
    %243 = vmatpush1.bf16.msra.mxu0 %v218
    %244 = vmatprep.subr.bf16.mxu0 0
    %245 = vmatpush1.bf16.msra.mxu0 %v217
    %246 = vmatprep.subr.bf16.mxu0 0
    %247 = vmatpush1.bf16.msra.mxu0 %v216
    %248 = vmatprep.subr.bf16.mxu0 0
    %249 = vmatpush2.bf16.msra.mxu0 0
    %250 = vmatprep.subr.bf16.mxu0 0
    %251 = vmatpush2.bf16.msra.mxu0 0
    %252 = vmatprep.subr.bf16.mxu0 0
    %253 = vmatpush2.bf16.msra.mxu0 0
    %254 = vmatprep.subr.bf16.mxu0 0
    %255 = vmatpush2.bf16.msra.mxu0 0
    %256 = vmatprep.subr.bf16.mxu0 0
    %257 = vmatpush2.bf16.msra.mxu0 0
    %258 = vmatprep.subr.bf16.mxu0 0
    %259 = vmatpush2.bf16.msra.mxu0 0
    %260 = vmatprep.subr.bf16.mxu0 0
    %261 = vmatpush2.bf16.msra.mxu0 0
    %262 = vmatprep.subr.bf16.mxu0 0
    %263 = vmatpush2.bf16.msra.mxu0 0
    %264 = vmatprep.mubr.bf16.mxu0 0
    %265 = vmatmul.mubr.bf16.gmra.mxu0 %v157
    %v266 = vpop.f32.mrf.mxu0
    %v267 = vadd.f32 %v182, %v266
    %v268 = vpop.f32.mrf.mxu0
    %v269 = vpop.f32.mrf.mxu0
    %v270 = vadd.f32 %v182, %v269
    %v271 = vpop.f32.mrf.mxu0
    %272 = vdwg.mxu0
    %v273 = vmax.f32 %v267, 0.0
    %v274 = vmax.f32 %v270, 0.0
    %v275 = vpack.c.bf16 %v274, %v273
    %v276 = vld [vmem:[#allocation8] sm:$0xf]
    %v277 = vld [vmem:[#allocation8 + $0x4] sm:$0xf]
    %v278 = vld [vmem:[#allocation8 + $0x8] sm:$0xf]
    %v279 = vld [vmem:[#allocation8 + $0xc] sm:$0xf]
    %v280 = vld [vmem:[#allocation8 + $0x10] sm:$0xf]
    %v281 = vld [vmem:[#allocation8 + $0x14] sm:$0xf]
    %v282 = vld [vmem:[#allocation8 + $0x18] sm:$0xf]
    %v283 = vld [vmem:[#allocation8 + $0x1c] sm:$0xf]
    %v284 = vld [vmem:[#allocation8 + $0x20] sm:$0xf]
    %v285 = vld [vmem:[#allocation8 + $0x24] sm:$0xf]
    %v286 = vld [vmem:[#allocation8 + $0x28] sm:$0xf]
    %v287 = vld [vmem:[#allocation8 + $0x2c] sm:$0xf]
    %v288 = vld [vmem:[#allocation8 + $0x30] sm:$0xf]
    %v289 = vld [vmem:[#allocation8 + $0x34] sm:$0xf]
    %v290 = vld [vmem:[#allocation8 + $0x38] sm:$0xf]
    %v291 = vld [vmem:[#allocation8 + $0x3c] sm:$0xf]
    %v292 = vld [vmem:[%s5] sm:$0x1]
    %v294 = vlaneseq
    %v295 = vshrl.u32 %v294, 7
    %v296 = vsub.s32 0, %v295
    %v297 = vrot.slane %v292, %v296
    %v315 = vunpack.c.l.b16 %v276
    %v316 = vunpack.c.l.b16 %v277
    %v317 = vunpack.c.l.b16 %v278
    %v318 = vunpack.c.l.b16 %v279
    %v319 = vunpack.c.l.b16 %v280
    %v320 = vunpack.c.l.b16 %v281
    %v321 = vunpack.c.l.b16 %v282
    %v322 = vunpack.c.l.b16 %v283
    %v323 = vunpack.c.l.b16 %v284
    %v324 = vunpack.c.l.b16 %v285
    %v325 = vunpack.c.l.b16 %v286
    %v326 = vunpack.c.l.b16 %v287
    %v327 = vunpack.c.l.b16 %v288
    %v328 = vunpack.c.l.b16 %v289
    %v329 = vunpack.c.l.b16 %v290
    %v330 = vunpack.c.l.b16 %v291
    %v331 = vpack.c.b16 %v316, %v315
    %v332 = vpack.c.b16 %v318, %v317
    %v333 = vpack.c.b16 %v320, %v319
    %v334 = vpack.c.b16 %v322, %v321
    %v335 = vpack.c.b16 %v324, %v323
    %v336 = vpack.c.b16 %v326, %v325
    %v337 = vpack.c.b16 %v328, %v327
    %v338 = vpack.c.b16 %v330, %v329
    %347 = vmatprep.subr.bf16.mxu0 0
    %348 = vmatpush1.bf16.msra.mxu0 %v338
    %349 = vmatprep.subr.bf16.mxu0 0
    %350 = vmatpush1.bf16.msra.mxu0 %v337
    %351 = vmatprep.subr.bf16.mxu0 0
    %352 = vmatpush1.bf16.msra.mxu0 %v336
    %353 = vmatprep.subr.bf16.mxu0 0
    %354 = vmatpush1.bf16.msra.mxu0 %v335
    %355 = vmatprep.subr.bf16.mxu0 0
    %356 = vmatpush1.bf16.msra.mxu0 %v334
    %357 = vmatprep.subr.bf16.mxu0 0
    %358 = vmatpush1.bf16.msra.mxu0 %v333
    %359 = vmatprep.subr.bf16.mxu0 0
    %360 = vmatpush1.bf16.msra.mxu0 %v332
    %361 = vmatprep.subr.bf16.mxu0 0
    %362 = vmatpush1.bf16.msra.mxu0 %v331
    %363 = vmatprep.subr.bf16.mxu0 0
    %364 = vmatpush2.bf16.msra.mxu0 0
    %365 = vmatprep.subr.bf16.mxu0 0
    %366 = vmatpush2.bf16.msra.mxu0 0
    %367 = vmatprep.subr.bf16.mxu0 0
    %368 = vmatpush2.bf16.msra.mxu0 0
    %369 = vmatprep.subr.bf16.mxu0 0
    %370 = vmatpush2.bf16.msra.mxu0 0
    %371 = vmatprep.subr.bf16.mxu0 0
    %372 = vmatpush2.bf16.msra.mxu0 0
    %373 = vmatprep.subr.bf16.mxu0 0
    %374 = vmatpush2.bf16.msra.mxu0 0
    %375 = vmatprep.subr.bf16.mxu0 0
    %376 = vmatpush2.bf16.msra.mxu0 0
    %377 = vmatprep.subr.bf16.mxu0 0
    %378 = vmatpush2.bf16.msra.mxu0 0
    %379 = vmatprep.mubr.bf16.mxu0 0
    %380 = vmatmul.mubr.bf16.gmra.mxu0 %v160
    %v381 = vpop.f32.mrf.mxu0
    %v382 = vadd.f32 %v297, %v381
    %v383 = vpop.f32.mrf.mxu0
    %v384 = vpop.f32.mrf.mxu0
    %v385 = vadd.f32 %v297, %v384
    %v386 = vpop.f32.mrf.mxu0
    %387 = vdwg.mxu0
    %v388 = vmax.f32 %v382, 0.0
    %v389 = vmax.f32 %v385, 0.0
    %v390 = vpack.c.bf16 %v389, %v388
    %v391 = vld [vmem:[#allocation10] sm:$0xf]
    %v392 = vld [vmem:[#allocation10 + $0x4] sm:$0xf]
    %v393 = vld [vmem:[#allocation10 + $0x8] sm:$0xf]
    %v394 = vld [vmem:[#allocation10 + $0xc] sm:$0xf]
    %v395 = vld [vmem:[#allocation10 + $0x10] sm:$0xf]
    %v396 = vld [vmem:[#allocation10 + $0x14] sm:$0xf]
    %v397 = vld [vmem:[#allocation10 + $0x18] sm:$0xf]
    %v398 = vld [vmem:[#allocation10 + $0x1c] sm:$0xf]
    %v399 = vld [vmem:[#allocation10 + $0x20] sm:$0xf]
    %v400 = vld [vmem:[#allocation10 + $0x24] sm:$0xf]
    %v401 = vld [vmem:[#allocation10 + $0x28] sm:$0xf]
    %v402 = vld [vmem:[#allocation10 + $0x2c] sm:$0xf]
    %v403 = vld [vmem:[#allocation10 + $0x30] sm:$0xf]
    %v404 = vld [vmem:[#allocation10 + $0x34] sm:$0xf]
    %v405 = vld [vmem:[#allocation10 + $0x38] sm:$0xf]
    %v406 = vld [vmem:[#allocation10 + $0x3c] sm:$0xf]
    %v407 = vld [vmem:[#allocation11] sm:$0xf]
    %v408 = vld [vmem:[#allocation11 + $0x4] sm:$0xf]
    %v409 = vld [vmem:[#allocation11 + $0x8] sm:$0xf]
    %v410 = vld [vmem:[#allocation11 + $0xc] sm:$0xf]
    %v411 = vld [vmem:[#allocation11 + $0x10] sm:$0xf]
    %v412 = vld [vmem:[#allocation11 + $0x14] sm:$0xf]
    %v413 = vld [vmem:[#allocation11 + $0x18] sm:$0xf]
    %v414 = vld [vmem:[#allocation11 + $0x1c] sm:$0xf]
    %v415 = vld [vmem:[#allocation11 + $0x20] sm:$0xf]
    %v416 = vld [vmem:[#allocation11 + $0x24] sm:$0xf]
    %v417 = vld [vmem:[#allocation11 + $0x28] sm:$0xf]
    %v418 = vld [vmem:[#allocation11 + $0x2c] sm:$0xf]
    %v419 = vld [vmem:[#allocation11 + $0x30] sm:$0xf]
    %v420 = vld [vmem:[#allocation11 + $0x34] sm:$0xf]
    %v421 = vld [vmem:[#allocation11 + $0x38] sm:$0xf]
    %v422 = vld [vmem:[#allocation11 + $0x3c] sm:$0xf]
    %v439 = vunpack.c.l.b16 %v407
    %v440 = vunpack.c.l.b16 %v408
    %v441 = vunpack.c.l.b16 %v409
    %v442 = vunpack.c.l.b16 %v410
    %v443 = vunpack.c.l.b16 %v411
    %v444 = vunpack.c.l.b16 %v412
    %v445 = vunpack.c.l.b16 %v413
    %v446 = vunpack.c.l.b16 %v414
    %v447 = vunpack.c.l.b16 %v415
    %v448 = vunpack.c.l.b16 %v416
    %v449 = vunpack.c.l.b16 %v417
    %v450 = vunpack.c.l.b16 %v418
    %v451 = vunpack.c.l.b16 %v419
    %v452 = vunpack.c.l.b16 %v420
    %v453 = vunpack.c.l.b16 %v421
    %v454 = vunpack.c.l.b16 %v422
    %v455 = vpack.c.b16 %v440, %v439
    %v456 = vpack.c.b16 %v442, %v441
    %v457 = vpack.c.b16 %v444, %v443
    %v458 = vpack.c.b16 %v446, %v445
    %v459 = vpack.c.b16 %v448, %v447
    %v460 = vpack.c.b16 %v450, %v449
    %v461 = vpack.c.b16 %v452, %v451
    %v462 = vpack.c.b16 %v454, %v453
    %471 = vmatprep.subr.bf16.mxu0 0
    %472 = vmatpush1.bf16.msra.mxu0 %v462
    %473 = vmatprep.subr.bf16.mxu0 0
    %474 = vmatpush1.bf16.msra.mxu0 %v461
    %475 = vmatprep.subr.bf16.mxu0 0
    %476 = vmatpush1.bf16.msra.mxu0 %v460
    %477 = vmatprep.subr.bf16.mxu0 0
    %478 = vmatpush1.bf16.msra.mxu0 %v459
    %479 = vmatprep.subr.bf16.mxu0 0
    %480 = vmatpush1.bf16.msra.mxu0 %v458
    %481 = vmatprep.subr.bf16.mxu0 0
    %482 = vmatpush1.bf16.msra.mxu0 %v457
    %483 = vmatprep.subr.bf16.mxu0 0
    %484 = vmatpush1.bf16.msra.mxu0 %v456
    %485 = vmatprep.subr.bf16.mxu0 0
    %486 = vmatpush1.bf16.msra.mxu0 %v455
    %487 = vmatprep.subr.bf16.mxu0 0
    %488 = vmatpush2.bf16.msra.mxu0 0
    %489 = vmatprep.subr.bf16.mxu0 0
    %490 = vmatpush2.bf16.msra.mxu0 0
    %491 = vmatprep.subr.bf16.mxu0 0
    %492 = vmatpush2.bf16.msra.mxu0 0
    %493 = vmatprep.subr.bf16.mxu0 0
    %494 = vmatpush2.bf16.msra.mxu0 0
    %495 = vmatprep.subr.bf16.mxu0 0
    %496 = vmatpush2.bf16.msra.mxu0 0
    %497 = vmatprep.subr.bf16.mxu0 0
    %498 = vmatpush2.bf16.msra.mxu0 0
    %499 = vmatprep.subr.bf16.mxu0 0
    %500 = vmatpush2.bf16.msra.mxu0 0
    %501 = vmatprep.subr.bf16.mxu0 0
    %502 = vmatpush2.bf16.msra.mxu0 0
    %503 = vmatprep.mubr.bf16.mxu0 0
    %504 = vmatmul.mubr.bf16.gmra.mxu0 %v390
    %v505 = vpop.f32.mrf.mxu0
    %v506 = vadd.f32 0.0, %v505
    %v507 = vpop.f32.mrf.mxu0
    %v508 = vpop.f32.mrf.mxu0
    %v509 = vadd.f32 0.0, %v508
    %v510 = vpop.f32.mrf.mxu0
    %511 = vdwg.mxu0
    %v528 = vunpack.c.l.b16 %v391
    %v529 = vunpack.c.l.b16 %v392
    %v530 = vunpack.c.l.b16 %v393
    %v531 = vunpack.c.l.b16 %v394
    %v532 = vunpack.c.l.b16 %v395
    %v533 = vunpack.c.l.b16 %v396
    %v534 = vunpack.c.l.b16 %v397
    %v535 = vunpack.c.l.b16 %v398
    %v536 = vunpack.c.l.b16 %v399
    %v537 = vunpack.c.l.b16 %v400
    %v538 = vunpack.c.l.b16 %v401
    %v539 = vunpack.c.l.b16 %v402
    %v540 = vunpack.c.l.b16 %v403
    %v541 = vunpack.c.l.b16 %v404
    %v542 = vunpack.c.l.b16 %v405
    %v543 = vunpack.c.l.b16 %v406
    %v544 = vpack.c.b16 %v529, %v528
    %v545 = vpack.c.b16 %v531, %v530
    %v546 = vpack.c.b16 %v533, %v532
    %v547 = vpack.c.b16 %v535, %v534
    %v548 = vpack.c.b16 %v537, %v536
    %v549 = vpack.c.b16 %v539, %v538
    %v550 = vpack.c.b16 %v541, %v540
    %v551 = vpack.c.b16 %v543, %v542
    %560 = vmatprep.subr.bf16.mxu0 0
    %561 = vmatpush1.bf16.msra.mxu0 %v551
    %562 = vmatprep.subr.bf16.mxu0 0
    %563 = vmatpush1.bf16.msra.mxu0 %v550
    %564 = vmatprep.subr.bf16.mxu0 0
    %565 = vmatpush1.bf16.msra.mxu0 %v549
    %566 = vmatprep.subr.bf16.mxu0 0
    %567 = vmatpush1.bf16.msra.mxu0 %v548
    %568 = vmatprep.subr.bf16.mxu0 0
    %569 = vmatpush1.bf16.msra.mxu0 %v547
    %570 = vmatprep.subr.bf16.mxu0 0
    %571 = vmatpush1.bf16.msra.mxu0 %v546
    %572 = vmatprep.subr.bf16.mxu0 0
    %573 = vmatpush1.bf16.msra.mxu0 %v545
    %574 = vmatprep.subr.bf16.mxu0 0
    %575 = vmatpush1.bf16.msra.mxu0 %v544
    %576 = vmatprep.subr.bf16.mxu0 0
    %577 = vmatpush2.bf16.msra.mxu0 0
    %578 = vmatprep.subr.bf16.mxu0 0
    %579 = vmatpush2.bf16.msra.mxu0 0
    %580 = vmatprep.subr.bf16.mxu0 0
    %581 = vmatpush2.bf16.msra.mxu0 0
    %582 = vmatprep.subr.bf16.mxu0 0
    %583 = vmatpush2.bf16.msra.mxu0 0
    %584 = vmatprep.subr.bf16.mxu0 0
    %585 = vmatpush2.bf16.msra.mxu0 0
    %586 = vmatprep.subr.bf16.mxu0 0
    %587 = vmatpush2.bf16.msra.mxu0 0
    %588 = vmatprep.subr.bf16.mxu0 0
    %589 = vmatpush2.bf16.msra.mxu0 0
    %590 = vmatprep.subr.bf16.mxu0 0
    %591 = vmatpush2.bf16.msra.mxu0 0
    %592 = vmatprep.mubr.bf16.mxu0 0
    %593 = vmatmul.mubr.bf16.gmra.mxu0 %v275
    %v594 = vpop.f32.mrf.mxu0
    %v595 = vadd.f32 %v506, %v594
    %v596 = vpop.f32.mrf.mxu0
    %v597 = vpop.f32.mrf.mxu0
    %v598 = vadd.f32 %v509, %v597
    %v599 = vpop.f32.mrf.mxu0
    %600 = vdwg.mxu0
    %v601 = vld [vmem:[%s8] sm:$0x1]
    %v603 = vlaneseq
    %v604 = vshrl.u32 %v603, 7
    %v605 = vsub.s32 0, %v604
    %v606 = vrot.slane %v601, %v605
    %v608 = vadd.f32 %v595, %v606
    %v609 = vadd.f32 %v598, %v606
    %v610 = vmax.f32 %v608, 0.0
    %v611 = vmax.f32 %v609, 0.0
    %v612 = vpack.c.bf16 %v611, %v610
    %v613 = vld [vmem:[#allocation13] sm:$0xf]
    %v614 = vld [vmem:[#allocation13 + $0x4] sm:$0xf]
    %v615 = vld [vmem:[#allocation13 + $0x8] sm:$0xf]
    %v616 = vld [vmem:[#allocation13 + $0xc] sm:$0xf]
    %v617 = vld [vmem:[#allocation13 + $0x10] sm:$0xf]
    %v618 = vld [vmem:[#allocation13 + $0x14] sm:$0xf]
    %v619 = vld [vmem:[#allocation13 + $0x18] sm:$0xf]
    %v620 = vld [vmem:[#allocation13 + $0x1c] sm:$0xf]
    %v621 = vld [vmem:[#allocation13 + $0x20] sm:$0xf]
    %v622 = vld [vmem:[#allocation13 + $0x24] sm:$0xf]
    %v623 = vld [vmem:[#allocation13 + $0x28] sm:$0xf]
    %v624 = vld [vmem:[#allocation13 + $0x2c] sm:$0xf]
    %v625 = vld [vmem:[#allocation13 + $0x30] sm:$0xf]
    %v626 = vld [vmem:[#allocation13 + $0x34] sm:$0xf]
    %v627 = vld [vmem:[#allocation13 + $0x38] sm:$0xf]
    %v628 = vld [vmem:[#allocation13 + $0x3c] sm:$0xf]
    %v629 = vld [vmem:[%s10] sm:$0x1]
    %v631 = vlaneseq
    %v632 = vshrl.u32 %v631, 7
    %v633 = vsub.s32 0, %v632
    %v634 = vrot.slane %v629, %v633
    %v652 = vunpack.c.l.b16 %v613
    %v653 = vunpack.c.l.b16 %v614
    %v654 = vunpack.c.l.b16 %v615
    %v655 = vunpack.c.l.b16 %v616
    %v656 = vunpack.c.l.b16 %v617
    %v657 = vunpack.c.l.b16 %v618
    %v658 = vunpack.c.l.b16 %v619
    %v659 = vunpack.c.l.b16 %v620
    %v660 = vunpack.c.l.b16 %v621
    %v661 = vunpack.c.l.b16 %v622
    %v662 = vunpack.c.l.b16 %v623
    %v663 = vunpack.c.l.b16 %v624
    %v664 = vunpack.c.l.b16 %v625
    %v665 = vunpack.c.l.b16 %v626
    %v666 = vunpack.c.l.b16 %v627
    %v667 = vunpack.c.l.b16 %v628
    %v668 = vpack.c.b16 %v653, %v652
    %v669 = vpack.c.b16 %v655, %v654
    %v670 = vpack.c.b16 %v657, %v656
    %v671 = vpack.c.b16 %v659, %v658
    %v672 = vpack.c.b16 %v661, %v660
    %v673 = vpack.c.b16 %v663, %v662
    %v674 = vpack.c.b16 %v665, %v664
    %v675 = vpack.c.b16 %v667, %v666
    %684 = vmatprep.subr.bf16.mxu0 0
    %685 = vmatpush1.bf16.msra.mxu0 %v675
    %686 = vmatprep.subr.bf16.mxu0 0
    %687 = vmatpush1.bf16.msra.mxu0 %v674
    %688 = vmatprep.subr.bf16.mxu0 0
    %689 = vmatpush1.bf16.msra.mxu0 %v673
    %690 = vmatprep.subr.bf16.mxu0 0
    %691 = vmatpush1.bf16.msra.mxu0 %v672
    %692 = vmatprep.subr.bf16.mxu0 0
    %693 = vmatpush1.bf16.msra.mxu0 %v671
    %694 = vmatprep.subr.bf16.mxu0 0
    %695 = vmatpush1.bf16.msra.mxu0 %v670
    %696 = vmatprep.subr.bf16.mxu0 0
    %697 = vmatpush1.bf16.msra.mxu0 %v669
    %698 = vmatprep.subr.bf16.mxu0 0
    %699 = vmatpush1.bf16.msra.mxu0 %v668
    %700 = vmatprep.subr.bf16.mxu0 0
    %701 = vmatpush2.bf16.msra.mxu0 0
    %702 = vmatprep.subr.bf16.mxu0 0
    %703 = vmatpush2.bf16.msra.mxu0 0
    %704 = vmatprep.subr.bf16.mxu0 0
    %705 = vmatpush2.bf16.msra.mxu0 0
    %706 = vmatprep.subr.bf16.mxu0 0
    %707 = vmatpush2.bf16.msra.mxu0 0
    %708 = vmatprep.subr.bf16.mxu0 0
    %709 = vmatpush2.bf16.msra.mxu0 0
    %710 = vmatprep.subr.bf16.mxu0 0
    %711 = vmatpush2.bf16.msra.mxu0 0
    %712 = vmatprep.subr.bf16.mxu0 0
    %713 = vmatpush2.bf16.msra.mxu0 0
    %714 = vmatprep.subr.bf16.mxu0 0
    %715 = vmatpush2.bf16.msra.mxu0 0
    %716 = vmatprep.mubr.bf16.mxu0 0
    %717 = vmatmul.mubr.bf16.gmra.mxu0 %v612
    %v718 = vpop.f32.mrf.mxu0
    %v719 = vadd.f32 %v634, %v718
    %v720 = vpop.f32.mrf.mxu0
    %v721 = vpop.f32.mrf.mxu0
    %v722 = vadd.f32 %v634, %v721
    %v723 = vpop.f32.mrf.mxu0
    %724 = vdwg.mxu0
    %v725 = vpack.c.bf16 %v722, %v719
    %v726 = vld [vmem:[#allocation14] sm:$0xf]
    %v727 = vld [vmem:[#allocation14 + $0x4] sm:$0xf]
    %v728 = vld [vmem:[#allocation14 + $0x8] sm:$0xf]
    %v729 = vld [vmem:[#allocation14 + $0xc] sm:$0xf]
    %v730 = vld [vmem:[#allocation14 + $0x10] sm:$0xf]
    %v731 = vld [vmem:[#allocation14 + $0x14] sm:$0xf]
    %v732 = vld [vmem:[#allocation14 + $0x18] sm:$0xf]
    %v733 = vld [vmem:[#allocation14 + $0x1c] sm:$0xf]
    %v734 = vld [vmem:[#allocation14 + $0x20] sm:$0xf]
    %v735 = vld [vmem:[#allocation14 + $0x24] sm:$0xf]
    %v736 = vld [vmem:[#allocation14 + $0x28] sm:$0xf]
    %v737 = vld [vmem:[#allocation14 + $0x2c] sm:$0xf]
    %v738 = vld [vmem:[#allocation14 + $0x30] sm:$0xf]
    %v739 = vld [vmem:[#allocation14 + $0x34] sm:$0xf]
    %v740 = vld [vmem:[#allocation14 + $0x38] sm:$0xf]
    %v741 = vld [vmem:[#allocation14 + $0x3c] sm:$0xf]
    %v742 = vld [vmem:[%s12] sm:$0x1]
    %v744 = vlaneseq
    %v745 = vshrl.u32 %v744, 7
    %v746 = vsub.s32 0, %v745
    %v747 = vrot.slane %v742, %v746
    %v765 = vunpack.c.l.b16 %v726
    %v766 = vunpack.c.l.b16 %v727
    %v767 = vunpack.c.l.b16 %v728
    %v768 = vunpack.c.l.b16 %v729
    %v769 = vunpack.c.l.b16 %v730
    %v770 = vunpack.c.l.b16 %v731
    %v771 = vunpack.c.l.b16 %v732
    %v772 = vunpack.c.l.b16 %v733
    %v773 = vunpack.c.l.b16 %v734
    %v774 = vunpack.c.l.b16 %v735
    %v775 = vunpack.c.l.b16 %v736
    %v776 = vunpack.c.l.b16 %v737
    %v777 = vunpack.c.l.b16 %v738
    %v778 = vunpack.c.l.b16 %v739
    %v779 = vunpack.c.l.b16 %v740
    %v780 = vunpack.c.l.b16 %v741
    %v781 = vpack.c.b16 %v766, %v765
    %v782 = vpack.c.b16 %v768, %v767
    %v783 = vpack.c.b16 %v770, %v769
    %v784 = vpack.c.b16 %v772, %v771
    %v785 = vpack.c.b16 %v774, %v773
    %v786 = vpack.c.b16 %v776, %v775
    %v787 = vpack.c.b16 %v778, %v777
    %v788 = vpack.c.b16 %v780, %v779
    %797 = vmatprep.subr.bf16.mxu0 0
    %798 = vmatpush1.bf16.msra.mxu0 %v788
    %799 = vmatprep.subr.bf16.mxu0 0
    %800 = vmatpush1.bf16.msra.mxu0 %v787
    %801 = vmatprep.subr.bf16.mxu0 0
    %802 = vmatpush1.bf16.msra.mxu0 %v786
    %803 = vmatprep.subr.bf16.mxu0 0
    %804 = vmatpush1.bf16.msra.mxu0 %v785
    %805 = vmatprep.subr.bf16.mxu0 0
    %806 = vmatpush1.bf16.msra.mxu0 %v784
    %807 = vmatprep.subr.bf16.mxu0 0
    %808 = vmatpush1.bf16.msra.mxu0 %v783
    %809 = vmatprep.subr.bf16.mxu0 0
    %810 = vmatpush1.bf16.msra.mxu0 %v782
    %811 = vmatprep.subr.bf16.mxu0 0
    %812 = vmatpush1.bf16.msra.mxu0 %v781
    %813 = vmatprep.subr.bf16.mxu0 0
    %814 = vmatpush2.bf16.msra.mxu0 0
    %815 = vmatprep.subr.bf16.mxu0 0
    %816 = vmatpush2.bf16.msra.mxu0 0
    %817 = vmatprep.subr.bf16.mxu0 0
    %818 = vmatpush2.bf16.msra.mxu0 0
    %819 = vmatprep.subr.bf16.mxu0 0
    %820 = vmatpush2.bf16.msra.mxu0 0
    %821 = vmatprep.subr.bf16.mxu0 0
    %822 = vmatpush2.bf16.msra.mxu0 0
    %823 = vmatprep.subr.bf16.mxu0 0
    %824 = vmatpush2.bf16.msra.mxu0 0
    %825 = vmatprep.subr.bf16.mxu0 0
    %826 = vmatpush2.bf16.msra.mxu0 0
    %827 = vmatprep.subr.bf16.mxu0 0
    %828 = vmatpush2.bf16.msra.mxu0 0
    %829 = vmatprep.mubr.bf16.mxu0 0
    %830 = vmatmul.mubr.bf16.gmra.mxu0 %v725
    %v831 = vpop.f32.mrf.mxu0
    %v832 = vadd.f32 %v747, %v831
    %v833 = vpop.f32.mrf.mxu0
    %v834 = vpop.f32.mrf.mxu0
    %v835 = vadd.f32 %v747, %v834
    %v836 = vpop.f32.mrf.mxu0
    %837 = vdwg.mxu0
    %v838 = vtanh.pop %v832
    %v839 = vtanh.pop %v835
    %v840 = vpack.c.bf16 %v839, %v838
    %v842 = vunpack.c.l.b16 %v840
    %v843 = vunpack.c.h.b16 %v840
    %v844 = vpack.c.b16 %v842, %v842
    %v845 = vpack.c.b16 %v843, %v843
    %848 = vst [vmem:[#allocation16] sm:$0xf] %v844
    %849 = vst [vmem:[#allocation16 + $0x4] sm:$0xf] %v845
    // Predicated region
    $region86: #{tpu_custom_call.1} parent=1 // pred_check
      _
    $region87: #{tpu_custom_call.1} parent=1 // pred_check_branch
      %851 = sbr.rel (0) target = $region89
    $region88: #{tpu_custom_call.1} parent=1 // pred_region
      %s853 = ssub.s32 128, 128
      %854 = vsyncadd [#allocation4], %s853
      %s855 = sshll.u32 [#allocation16], 4
      %s856 = int_to_ptr.vmem [resolvable:$true] %s855
      %861 = dma.vmem_to_hbm [thread:$0]  %s856, 128, %s13, [#allocation4], 64, 64, 4
    $region89: #{tpu_custom_call.1} parent=1 // pred_fallthru
      _
    // Predicated region
    $region90: #{tpu_custom_call.1} parent=1 // pred_check
      _
    $region91: #{tpu_custom_call.1} parent=1 // pred_check_branch
      %863 = sbr.rel (0) target = $region93
    $region92: #{tpu_custom_call.1} parent=1 // pred_region
      %864 = dma.done [#allocation4], 128
    $region93: #{tpu_custom_call.1} parent=1 // pred_fallthru
      _
    %865 = vsyncpa [#allocation3], 1
    %866 = vsyncpa [#allocation6], 1
    %867 = vsyncpa [#allocation9], 1
    %868 = vsyncpa [#allocation12], 1
    %869 = vsyncpa [#allocation15], 1
    %870 = vsyncpa [#allocation4], 1

</llo_original>
